<compile_context>
chip_gen: v7x
topology: tpu7x:2x2x1
jax: 0.10.0
libtpu: 0.0.40
codegen_flags: <defaults>
</compile_context>

<pallas_src>
import functools

import jax
import jax.numpy as jnp
from jax.experimental import pallas as pl
from jax.experimental.pallas import tpu as pltpu


# ----------------------------------------------------------------------------
# Kernels
# ----------------------------------------------------------------------------
def _ge2e_fused_kernel(*refs, N, M, has_n2):
    """Single-shot fused kernel (whole problem resident in VMEM).

    refs = (labels, [n2,] e, w, b, loss):
      labels: (1, NM) int32 VMEM; n2: (1, NM) f32 VMEM (only if has_n2);
      e: (NM, D) VMEM; w/b: (1,1) f32 SMEM; loss: (1,1) f32 SMEM.
    """
    if has_n2:
        labels_ref, n2_ref, e_ref, w_ref, b_ref, loss_ref = refs
    else:
        labels_ref, e_ref, w_ref, b_ref, loss_ref = refs
        n2_ref = None

    inv_m = 1.0 / M
    inv_m1 = 1.0 / (M - 1)

    e = e_ref[...]                                              # (NM, D)
    lab = labels_ref[...]                                       # (1, NM) int32
    NM = e.shape[0]

    # Speaker-membership mask built in registers (no HBM traffic for it).
    spk = jax.lax.broadcasted_iota(jnp.int32, (N, NM), 0)       # (N, NM)
    own = lab == spk                                            # (N, NM) bool
    g = own.astype(e.dtype)

    # Per-speaker sums s[j] = sum_i e[j*M + i] via one small MXU matmul.
    s = jnp.dot(g, e, preferred_element_type=jnp.float32)       # (N, D) f32

    # sim_s[j, idx] = <s[j], e[idx]>.  NM stays on the lane axis, so every
    # downstream VPU/EUP op is lane-dense.
    sim_s = jax.lax.dot_general(
        s.astype(e.dtype), e, (((1,), (1,)), ((), ())),
        preferred_element_type=jnp.float32)                     # (N, NM) f32

    n2 = jnp.float32(1.0) if n2_ref is None else n2_ref[...]    # (1, NM) / scalar

    # Own-speaker column gets the leave-one-out correction:
    #   <(s[j] - e[idx]) / (M-1), e[idx]> = (sim_s - ||e[idx]||^2) / (M-1)
    sim = jnp.where(own, (sim_s - n2) * inv_m1, sim_s * inv_m)

    gf = own.astype(jnp.float32)
    logits = w_ref[0, 0] * sim + b_ref[0, 0]                    # (N, NM)
    mx = jnp.max(logits, axis=0, keepdims=True)                 # (1, NM)
    lse = mx + jnp.log(jnp.sum(jnp.exp(logits - mx), axis=0, keepdims=True))
    tgt = jnp.sum(logits * gf, axis=0, keepdims=True)           # (1, NM)
    loss_ref[0, 0] = jnp.mean(lse - tgt)


def _ge2e_centroid_kernel(labels_ref, e_ref, s_ref, *, N):
    """Phase A: accumulate per-speaker sums over NM tiles ("arbitrary" axis)."""
    @pl.when(pl.program_id(0) == 0)
    def _():
        s_ref[...] = jnp.zeros_like(s_ref)

    T = labels_ref.shape[1]
    spk = jax.lax.broadcasted_iota(jnp.int32, (N, T), 0)        # (N, T)
    g = (labels_ref[...] == spk).astype(e_ref.dtype)            # 0/1, in e dtype
    s_ref[...] += jnp.dot(g, e_ref[...], preferred_element_type=jnp.float32)


def _ge2e_loss_tile_kernel(*refs, N, M, has_n2):
    """Phase B: per-tile logits / LSE; emits a lane-dense per-utterance loss row.

    refs = (labels, [n2,] s, e, w, b, out): labels (1,T) int32; n2 (1,T) f32;
    s (N,D) f32; e (T,D); w/b (1,1) SMEM; out (1,T) f32.
    """
    if has_n2:
        labels_ref, n2_ref, s_ref, e_ref, w_ref, b_ref, out_ref = refs
    else:
        labels_ref, s_ref, e_ref, w_ref, b_ref, out_ref = refs
        n2_ref = None

    inv_m = 1.0 / M
    inv_m1 = 1.0 / (M - 1)

    e = e_ref[...]                                              # (T, D)
    lab = labels_ref[...]                                       # (1, T) int32
    T = e.shape[0]

    spk = jax.lax.broadcasted_iota(jnp.int32, (N, T), 0)        # (N, T)
    own = lab == spk
    gf = own.astype(jnp.float32)

    s = s_ref[...]                                              # (N, D) f32
    sim_s = jax.lax.dot_general(
        s.astype(e.dtype), e, (((1,), (1,)), ((), ())),
        preferred_element_type=jnp.float32)                     # (N, T) f32

    n2 = jnp.float32(1.0) if n2_ref is None else n2_ref[...]
    sim = jnp.where(own, (sim_s - n2) * inv_m1, sim_s * inv_m)

    logits = w_ref[0, 0] * sim + b_ref[0, 0]                    # (N, T)
    mx = jnp.max(logits, axis=0, keepdims=True)
    lse = mx + jnp.log(jnp.sum(jnp.exp(logits - mx), axis=0, keepdims=True))
    tgt = jnp.sum(logits * gf, axis=0, keepdims=True)

    # Mask NM-padding columns (label == N) out of the per-utterance loss row.
    valid = (lab < N).astype(jnp.float32)                       # (1, T)
    out_ref[...] = valid * (lse - tgt)                          # lane-dense row


# ----------------------------------------------------------------------------
# Wrapper
# ----------------------------------------------------------------------------
def _round_up(x, m):
    return ((x + m - 1) // m) * m


def _vmem_budget_bytes():
    """~75% of physical per-core VMEM (~48 MiB v7x, ~96 MiB v5e/v6e)."""
    cap = 64 << 20  # conservative fallback (v7x per-TensorCore VMEM)
    try:
        info = pltpu.get_tpu_info()
        cap = int(getattr(info, "vmem_capacity_bytes", cap))
    except Exception:
        pass
    return (cap * 3) // 4


def ge2e_loss(e, w, b, N, M, *, dtype=jnp.bfloat16, assume_normalized=True,
              tile_nm=512, force_tiled=None):
    """GE2E loss matching the PyTorch module forward (mean cross-entropy).

    dtype: storage / MXU-input dtype for embeddings (bf16 halves HBM traffic;
      f32 for bit-accurate validation).
    assume_normalized: use ||e||^2 == 1 (module contract: e is L2-normalized).
      When False, a precomputed (1, NM) f32 norm row is passed to the kernel.
    tile_nm: NM-axis tile width (lanes) for the two-phase tiled path.
    force_tiled: override the automatic single-shot / tiled selection.
    """
    if M < 2:
        raise ValueError("GE2E loss needs M >= 2 utterances per speaker.")
    D = int(e.shape[-1])
    NM = N * M
    has_n2 = not assume_normalized
    itemsize = jnp.dtype(dtype).itemsize

    e_flat = jnp.reshape(e, (NM, D)).astype(dtype)
    labels = (jnp.arange(NM, dtype=jnp.int32) // M).reshape(1, NM)
    w2 = jnp.reshape(jnp.asarray(w, jnp.float32), (1, 1))
    b2 = jnp.reshape(jnp.asarray(b, jnp.float32), (1, 1))
    n2 = None
    if has_n2:
        ef32 = e_flat.astype(jnp.float32)
        n2 = jnp.sum(ef32 * ef32, axis=-1).reshape(1, NM)

    budget = _vmem_budget_bytes()
    smem_scalar = pl.BlockSpec(memory_space=pltpu.SMEM)

    # Single-shot footprint: inputs are single-buffered (no grid) + (N, NM) f32
    # temporaries for the softmax phase + slack for Mosaic internals.
    fused_bytes = (NM * D * itemsize
                   + 4 * NM * (2 if has_n2 else 1)
                   + 4 * N * D
                   + 6 * 4 * N * NM
                   + (1 << 20))
    use_tiled = (fused_bytes > budget) if force_tiled is None else bool(force_tiled)

    # TODO(synk): speaker-axis padding to a full sublane tile (8 f32 / 16 bf16
    # rows, with masked logits) is a perf-only cleanup left to callers.

    if not use_tiled:
        kern = functools.partial(_ge2e_fused_kernel, N=N, M=M, has_n2=has_n2)
        in_specs = [pl.BlockSpec(memory_space=pltpu.VMEM)]            # labels
        args = [labels]
        if has_n2:
            in_specs.append(pl.BlockSpec(memory_space=pltpu.VMEM))    # ||e||^2 row
            args.append(n2)
        in_specs += [pl.BlockSpec(memory_space=pltpu.VMEM),           # e
                     smem_scalar, smem_scalar]                        # w, b
        args += [e_flat, w2, b2]
        out = pl.pallas_call(
            kern,
            out_shape=jax.ShapeDtypeStruct((1, 1), jnp.float32),
            in_specs=in_specs,
            out_specs=pl.BlockSpec(memory_space=pltpu.SMEM),
            compiler_params=pltpu.CompilerParams(
                vmem_limit_bytes=int(min(max(fused_bytes, 4 << 20), budget))),
            cost_estimate=pl.CostEstimate(
                flops=4 * N * NM * D,
                transcendentals=N * NM + NM,
                bytes_accessed=NM * D * itemsize + 4 * NM * (2 if has_n2 else 1) + 4),
        )(*args)
        return out[0, 0]

    # ---- Two-phase NM-tiled path (production-size NM) ------------------------
    tile = min(_round_up(max(tile_nm, 128), 128), _round_up(NM, 128))
    NMp = _round_up(NM, tile)
    n_tiles = NMp // tile
    pad = NMp - NM

    e_p = jnp.pad(e_flat, ((0, pad), (0, 0)))                       # zero rows
    labels_p = jnp.pad(labels, ((0, 0), (0, pad)), constant_values=N)  # invalid spk
    n2_p = (jnp.pad(n2, ((0, 0), (0, pad)), constant_values=1.0)
            if has_n2 else None)

    lab_spec = pl.BlockSpec((1, tile), lambda i: (0, i))
    e_spec = pl.BlockSpec((tile, D), lambda i: (i, 0))

    # Phase A: per-speaker sums, resident f32 accumulator across NM tiles.
    phase_a_bytes = 2 * tile * (D * itemsize + 4) + 4 * N * D + (1 << 20)
    s = pl.pallas_call(
        functools.partial(_ge2e_centroid_kernel, N=N),
        out_shape=jax.ShapeDtypeStruct((N, D), jnp.float32),
        grid=(n_tiles,),
        in_specs=[lab_spec, e_spec],
        out_specs=pl.BlockSpec((N, D), lambda i: (0, 0)),
        compiler_params=pltpu.CompilerParams(
            dimension_semantics=("arbitrary",),
            vmem_limit_bytes=int(min(max(phase_a_bytes, 4 << 20), budget))),
        cost_estimate=pl.CostEstimate(
            flops=2 * N * NMp * D, transcendentals=0,
            bytes_accessed=NMp * (D * itemsize + 4) + 4 * N * D),
    )(labels_p, e_p)

    # Phase B: per-tile logits / LSE -> lane-dense per-utterance loss row.
    phase_b_bytes = (2 * tile * (D * itemsize + 4 * (2 if has_n2 else 1) + 4)
                     + 4 * N * D + 6 * 4 * N * tile + (1 << 20))
    kern_b = functools.partial(_ge2e_loss_tile_kernel, N=N, M=M, has_n2=has_n2)
    in_specs = [lab_spec]
    args = [labels_p]
    if has_n2:
        in_specs.append(pl.BlockSpec((1, tile), lambda i: (0, i)))
        args.append(n2_p)
    in_specs += [pl.BlockSpec((N, D), lambda i: (0, 0)),             # s (reused)
                 e_spec, smem_scalar, smem_scalar]                   # e, w, b
    args += [s, e_p, w2, b2]
    per_utt = pl.pallas_call(
        kern_b,
        out_shape=jax.ShapeDtypeStruct((1, NMp), jnp.float32),
        grid=(n_tiles,),
        in_specs=in_specs,
        out_specs=pl.BlockSpec((1, tile), lambda i: (0, i)),
        compiler_params=pltpu.CompilerParams(
            dimension_semantics=("parallel",),
            vmem_limit_bytes=int(min(max(phase_b_bytes, 4 << 20), budget))),
        cost_estimate=pl.CostEstimate(
            flops=2 * N * NMp * D,
            transcendentals=N * NMp + NMp,
            bytes_accessed=(NMp * (D * itemsize + 4 * (2 if has_n2 else 1))
                            + 4 * N * D + 4 * NMp)),
    )(*args)
    return jnp.sum(per_utt) / NM


# ----------------------------------------------------------------------------
# Pure-JAX reference mirroring the PyTorch forward (f32)
# ----------------------------------------------------------------------------
def ge2e_loss_ref(e, w, b, N, M):
    e = e.astype(jnp.float32)
    c = jnp.mean(e, axis=1)                 # (N, D)
    s = jnp.sum(e, axis=1)                  # (N, D)
    ef = e.reshape(N * M, -1)               # (NM, D)
    sim = ef @ c.T                          # (NM, N)
    own_vals = jnp.einsum(
        "nd,nd->n", (jnp.repeat(s, M, axis=0) - ef) / (M - 1), ef)
    r_ids = jnp.arange(N * M)[:, None] // M
    c_ids = jnp.arange(N)[None, :]
    own = r_ids == c_ids
    sim = jnp.where(own, own_vals[:, None], sim)
    logits = w * sim + b
    logp = jax.nn.log_softmax(logits, axis=1)
    return -jnp.mean(jnp.sum(jnp.where(own, logp, 0.0), axis=1))


if __name__ == "__main__":
    key = jax.random.PRNGKey(0)
    k1, k2 = jax.random.split(key)

    # Small shape implied by the module forward: e is (N, M, D), L2-normalized.
    N, M, D = 4, 8, 32
    e_raw = jax.random.normal(k1, (N, M, D), dtype=jnp.float32)
    e = e_raw / jnp.linalg.norm(e_raw, axis=-1, keepdims=True)

    # Deterministic parameters matching the nn.Parameter init in __init__.
    w = jnp.float32(10.0)
    b = jnp.float32(-5.0)

    ref = ge2e_loss_ref(e, w, b, N, M)

    # Fused single-shot path, f32 + general ||e||^2 row: tight check.
    loss_f32 = jax.block_until_ready(
        ge2e_loss(e, w, b, N, M, dtype=jnp.float32, assume_normalized=False))
    assert jnp.allclose(loss_f32, ref, atol=1e-4, rtol=1e-4), (loss_f32, ref)

    # Fused default perf path (bf16 storage, normalized-embedding contract).
    loss_bf16 = jax.block_until_ready(ge2e_loss(e, w, b, N, M))
    assert jnp.allclose(loss_bf16, ref, atol=1e-1, rtol=1e-1), (loss_bf16, ref)

    # Two-phase NM-tiled path (the production-size route), exercising NM padding
    # and multi-tile centroid accumulation with a 128-lane tile.
    N2, M2, D2 = 8, 20, 64          # NM = 160 -> padded to 2 tiles of 128
    e2_raw = jax.random.normal(k2, (N2, M2, D2), dtype=jnp.float32)
    e2 = e2_raw / jnp.linalg.norm(e2_raw, axis=-1, keepdims=True)
    ref2 = ge2e_loss_ref(e2, w, b, N2, M2)

    loss_t32 = jax.block_until_ready(
        ge2e_loss(e2, w, b, N2, M2, dtype=jnp.float32, assume_normalized=False,
                  tile_nm=128, force_tiled=True))
    assert jnp.allclose(loss_t32, ref2, atol=1e-4, rtol=1e-4), (loss_t32, ref2)

    loss_tbf = jax.block_until_ready(
        ge2e_loss(e2, w, b, N2, M2, tile_nm=128, force_tiled=True))
    assert jnp.allclose(loss_tbf, ref2, atol=1e-1, rtol=1e-1), (loss_tbf, ref2)

    print("KERNEL_OK")
</pallas_src>

<mosaic_0001>
module attributes {stable_mosaic.version = 11 : i64} {
  func.func @_ge2e_fused_kernel(%arg0: memref<1x32xi32, #tpu.memory_space<vmem>>, %arg1: memref<1x32xf32, #tpu.memory_space<vmem>>, %arg2: memref<32x32xf32, #tpu.memory_space<vmem>>, %arg3: memref<1x1xf32, #tpu.memory_space<smem>>, %arg4: memref<1x1xf32, #tpu.memory_space<smem>>, %arg5: memref<1x1xf32, #tpu.memory_space<smem>>) attributes {dimension_semantics = [], scalar_prefetch = 0 : i64, scratch_operands = 0 : i64, tpu.core_type = #tpu.core_type<tc>} {
    %c0 = arith.constant 0 : index
    %c0_0 = arith.constant 0 : index
    %0 = vector.load %arg2[%c0, %c0_0] : memref<32x32xf32, #tpu.memory_space<vmem>>, vector<32x32xf32>
    %c0_1 = arith.constant 0 : index
    %c0_2 = arith.constant 0 : index
    %1 = vector.load %arg0[%c0_1, %c0_2] : memref<1x32xi32, #tpu.memory_space<vmem>>, vector<1x32xi32>
    %2 = tpu.iota {dimensions = array<i32: 0>} : vector<4x32xi32>
    %3 = vector.broadcast %1 : vector<1x32xi32> to vector<4x32xi32>
    %4 = arith.cmpi eq, %3, %2 : vector<4x32xi32>
    %5 = arith.extui %4 : vector<4x32xi1> to vector<4x32xi32>
    %6 = arith.sitofp %5 : vector<4x32xi32> to vector<4x32xf32>
    %cst = arith.constant dense<0.000000e+00> : vector<4x32xf32>
    %7 = tpu.matmul %6, %0, %cst {dimension_numbers = #tpu.dot_dimension_numbers<[1], [0], [0], [1], [0, 0, 1, 1], [], []>} : vector<4x32xf32>, vector<32x32xf32>, vector<4x32xf32> -> vector<4x32xf32>
    %cst_3 = arith.constant dense<0.000000e+00> : vector<4x32xf32>
    %8 = tpu.matmul %7, %0, %cst_3 {dimension_numbers = #tpu.dot_dimension_numbers<[1], [1], [0], [0], [0, 0, 1, 0], [], []>} : vector<4x32xf32>, vector<32x32xf32>, vector<4x32xf32> -> vector<4x32xf32>
    %c0_4 = arith.constant 0 : index
    %c0_5 = arith.constant 0 : index
    %9 = vector.load %arg1[%c0_4, %c0_5] : memref<1x32xf32, #tpu.memory_space<vmem>>, vector<1x32xf32>
    %10 = vector.broadcast %9 : vector<1x32xf32> to vector<4x32xf32>
    %11 = arith.subf %8, %10 : vector<4x32xf32>
    %cst_6 = arith.constant 0.142857149 : f32
    %12 = vector.broadcast %cst_6 : f32 to vector<4x32xf32>
    %13 = arith.mulf %11, %12 : vector<4x32xf32>
    %cst_7 = arith.constant 1.250000e-01 : f32
    %14 = vector.broadcast %cst_7 : f32 to vector<4x32xf32>
    %15 = arith.mulf %8, %14 : vector<4x32xf32>
    %16 = arith.select %4, %13, %15 : vector<4x32xi1>, vector<4x32xf32>
    %17 = arith.extui %4 : vector<4x32xi1> to vector<4x32xi32>
    %18 = arith.sitofp %17 : vector<4x32xi32> to vector<4x32xf32>
    %c0_8 = arith.constant 0 : index
    %c0_9 = arith.constant 0 : index
    %19 = memref.load %arg3[%c0_8, %c0_9] : memref<1x1xf32, #tpu.memory_space<smem>>
    %20 = vector.broadcast %19 : f32 to vector<4x32xf32>
    %21 = arith.mulf %20, %16 : vector<4x32xf32>
    %c0_10 = arith.constant 0 : index
    %c0_11 = arith.constant 0 : index
    %22 = memref.load %arg4[%c0_10, %c0_11] : memref<1x1xf32, #tpu.memory_space<smem>>
    %23 = vector.broadcast %22 : f32 to vector<4x32xf32>
    %24 = arith.addf %21, %23 : vector<4x32xf32>
    %cst_12 = arith.constant dense<0xFF800000> : vector<32xf32>
    %25 = vector.multi_reduction <maximumf>, %24, %cst_12 [0] : vector<4x32xf32> to vector<32xf32>
    %26 = vector.shape_cast %25 : vector<32xf32> to vector<1x32xf32>
    %27 = vector.broadcast %26 : vector<1x32xf32> to vector<4x32xf32>
    %28 = arith.subf %24, %27 : vector<4x32xf32>
    %29 = math.exp %28 : vector<4x32xf32>
    %cst_13 = arith.constant dense<0.000000e+00> : vector<32xf32>
    %30 = vector.multi_reduction <add>, %29, %cst_13 [0] : vector<4x32xf32> to vector<32xf32>
    %31 = vector.shape_cast %30 : vector<32xf32> to vector<1x32xf32>
    %32 = math.log %31 : vector<1x32xf32>
    %33 = arith.addf %26, %32 : vector<1x32xf32>
    %34 = arith.mulf %24, %18 : vector<4x32xf32>
    %cst_14 = arith.constant dense<0.000000e+00> : vector<32xf32>
    %35 = vector.multi_reduction <add>, %34, %cst_14 [0] : vector<4x32xf32> to vector<32xf32>
    %36 = vector.shape_cast %35 : vector<32xf32> to vector<1x32xf32>
    %37 = arith.subf %33, %36 : vector<1x32xf32>
    %38 = vector.shape_cast %37 : vector<1x32xf32> to vector<1x1x32xf32>
    %cst_15 = arith.constant dense<0.000000e+00> : vector<1xf32>
    %39 = vector.multi_reduction <add>, %38, %cst_15 [1, 2] : vector<1x1x32xf32> to vector<1xf32>
    %40 = vector.shape_cast %39 : vector<1xf32> to vector<1x1x1xf32>
    %41 = vector.extract %40[0, 0, 0] : f32 from vector<1x1x1xf32>
    %cst_16 = arith.constant 3.200000e+01 : f32
    %42 = arith.divf %41, %cst_16 : f32
    %c0_17 = arith.constant 0 : index
    %c0_18 = arith.constant 0 : index
    %43 = memref.load %arg5[%c0_17, %c0_18] : memref<1x1xf32, #tpu.memory_space<smem>>
    memref.store %42, %arg5[%c0_17, %c0_18] : memref<1x1xf32, #tpu.memory_space<smem>>
    return
  }
}

</mosaic_0001>

<llo_original>
// kernel: tpu_custom_call.1
$region0: #{tpu_custom_call.1}
  #allocation0 [shape = 'u32[]', space=smem, size = 0x4, offset = 0x4, fixed_abs, tag = 'smem constant byte address 0x4 - core index']
  #allocation1 [shape = 'u32[144,128]{1,0:T(1,128)}', space=vmem, size = 0x12000, scoped, tag = 'internal scratch']
  #allocation2 [shape = 'f32[1,1]{1,0:T(1,128)S(6)}', space=smem, size = 0x200, scoped, tag = 'scoped memory for tpu_custom_call.1']
  #allocation3 [shape = 'f32[1,1]{1,0:T(1,128)S(6)}', space=smem, size = 0x200, scoped, tag = 'scoped memory for tpu_custom_call.1']
  %s0 = inlined_call_operand.vmem [shape: s32[1,32], index: 0, kind: input, shape index: {}]
  %s1 = inlined_call_operand.vmem [shape: f32[1,32], index: 1, kind: input, shape index: {}]
  %s2 = inlined_call_operand.hbm [shape: f32[32,32], index: 2, kind: input, shape index: {}]
  %s3 = inlined_call_operand.<no memory space> [shape: f32[1,1], index: 3, kind: input, shape index: {}]
  %s4 = inlined_call_operand.<no memory space> [shape: f32[1,1], index: 4, kind: input, shape index: {}]
  %s5 = inlined_call_operand.hbm [shape: f32[1,1], index: 5, kind: output, shape index: {}]
  %s6 = sld [smem:[#allocation0]]
  $region34: #{tpu_custom_call.1} parent=0
    _
  %s8 = ssub.s32 1, %s6
  %s9 = scalar_select 0, %s8, %s6
  %10 = sst [smem:[#allocation2]] %s3
  %11 = sst [smem:[#allocation3]] %s4
  $region1: #{tpu_custom_call.1} parent=0
    #allocation4 [shape = 'u8[16384]{0}', space=vmem, size = 0x4000, scoped, tag = 'input window, operand 2, single buffered']
    #allocation5 [shape = 's32[1]{0}', space=sflag, size = 0x4, scoped, tag = 'scoped memory for tpu_custom_call.1']
    #allocation6 [shape = 's32[1]{0}', space=sflag, size = 0x4, scoped, tag = 'scoped memory for tpu_custom_call.1']
    #allocation7 [shape = 'u8[512]{0}', space=smem, size = 0x200, scoped, tag = 'output window, operand 0, single buffered']
    %12 = vsyncpa [#allocation5], 0
    %13 = vsyncpa [#allocation6], 0
    // Predicated region
    $region2: #{tpu_custom_call.1} parent=1 // pred_check
      _
    $region3: #{tpu_custom_call.1} parent=1 // pred_check_branch
      %15 = sbr.rel (0) target = $region5
    $region4: #{tpu_custom_call.1} parent=1 // pred_region
      _
    $region5: #{tpu_custom_call.1} parent=1 // pred_fallthru
      _
    // Predicated region
    $region6: #{tpu_custom_call.1} parent=1 // pred_check
      _
    $region7: #{tpu_custom_call.1} parent=1 // pred_check_branch
      %17 = sbr.rel (0) target = $region9
    $region8: #{tpu_custom_call.1} parent=1 // pred_region
      _
    $region9: #{tpu_custom_call.1} parent=1 // pred_fallthru
      _
    // Predicated region
    $region10: #{tpu_custom_call.1} parent=1 // pred_check
      _
    $region11: #{tpu_custom_call.1} parent=1 // pred_check_branch
      %19 = sbr.rel (0) target = $region13
    $region12: #{tpu_custom_call.1} parent=1 // pred_region
      %s21 = ssub.s32 512, 512
      %22 = vsyncadd [#allocation5], %s21
      %s23 = sshll.u32 [#allocation4], 4
      %s24 = int_to_ptr.vmem [resolvable:$true] %s23
      %29 = dma.hbm_to_vmem [thread:$0]  %s2, 512, %s24, [#allocation5], 128, 128, 8
    $region13: #{tpu_custom_call.1} parent=1 // pred_fallthru
      _
    // Predicated region
    $region14: #{tpu_custom_call.1} parent=1 // pred_check
      _
    $region15: #{tpu_custom_call.1} parent=1 // pred_check_branch
      %31 = sbr.rel (0) target = $region17
    $region16: #{tpu_custom_call.1} parent=1 // pred_region
      _
    $region17: #{tpu_custom_call.1} parent=1 // pred_fallthru
      _
    // Predicated region
    $region18: #{tpu_custom_call.1} parent=1 // pred_check
      _
    $region19: #{tpu_custom_call.1} parent=1 // pred_check_branch
      %33 = sbr.rel (0) target = $region21
    $region20: #{tpu_custom_call.1} parent=1 // pred_region
      _
    $region21: #{tpu_custom_call.1} parent=1 // pred_fallthru
      _
    // Predicated region
    $region22: #{tpu_custom_call.1} parent=1 // pred_check
      _
    $region23: #{tpu_custom_call.1} parent=1 // pred_check_branch
      %35 = sbr.rel (0) target = $region25
    $region24: #{tpu_custom_call.1} parent=1 // pred_region
      %36 = dma.done [#allocation5], 512
    $region25: #{tpu_custom_call.1} parent=1 // pred_fallthru
      _
    %v37 = vld [vmem:[#allocation4] sm:$0xff]
    %v38 = vld [vmem:[#allocation4 + $0x8] sm:$0xff]
    %v39 = vld [vmem:[#allocation4 + $0x10] sm:$0xff]
    %v40 = vld [vmem:[#allocation4 + $0x18] sm:$0xff]
    %v41 = vld [vmem:[%s0] sm:$0x1]
    %v42 = vlaneseq
    %v43 = vshrl.u32 %v42, 7
    %v44 = vlaneseq
    %v45 = vshrl.u32 %v44, 7
    %v46 = vsub.s32 0, %v45
    %v47 = vrot.slane %v41, %v46
    %vm48 = vcmp.eq.s32.totalorder %v47, %v43
    %v49 = vsel %vm48, 1, 0
    %v50 = vcvt.s32.f32 %v49
    %vm51 = vcmask 261120
    %v53 = vsel %vm51, %v50, 0
    %55 = vmatprep.subr.mxu0 0.0
    %56 = vmatpush1.msra.mxu0 %v37
    %57 = vmatprep.subr.mxu0 0.0
    %58 = vmatpush1.msra.mxu0 %v38
    %59 = vmatprep.subr.mxu0 0.0
    %60 = vmatpush1.msra.mxu0 %v39
    %61 = vmatprep.subr.mxu0 0.0
    %62 = vmatpush1.msra.mxu0 %v40
    %63 = vmatprep.subr.mxu0 0.0
    %64 = vmatpush1.msra.mxu0 0.0
    %65 = vmatprep.subr.mxu0 0.0
    %66 = vmatpush1.msra.mxu0 0.0
    %67 = vmatprep.subr.mxu0 0.0
    %68 = vmatpush1.msra.mxu0 0.0
    %69 = vmatprep.subr.mxu0 0.0
    %70 = vmatpush1.msra.mxu0 0.0
    %71 = vmatprep.subr.mxu0 0.0
    %72 = vmatpush1.msra.mxu0 0.0
    %73 = vmatprep.subr.mxu0 0.0
    %74 = vmatpush1.msra.mxu0 0.0
    %75 = vmatprep.subr.mxu0 0.0
    %76 = vmatpush1.msra.mxu0 0.0
    %77 = vmatprep.subr.mxu0 0.0
    %78 = vmatpush1.msra.mxu0 0.0
    %79 = vmatprep.subr.mxu0 0.0
    %80 = vmatpush1.msra.mxu0 0.0
    %81 = vmatprep.subr.mxu0 0.0
    %82 = vmatpush1.msra.mxu0 0.0
    %83 = vmatprep.subr.mxu0 0.0
    %84 = vmatpush1.msra.mxu0 0.0
    %85 = vmatprep.subr.mxu0 0.0
    %86 = vmatpush1.msra.mxu0 0.0
    %87 = vmatprep.subr.mxu0 0.0
    %88 = vmatpush1.msra.mxu0 0.0
    %89 = vmatprep.subr.mxu0 0.0
    %90 = vmatpush1.msra.mxu0 0.0
    %91 = vmatprep.subr.mxu0 0.0
    %92 = vmatpush1.msra.mxu0 0.0
    %93 = vmatprep.subr.mxu0 0.0
    %94 = vmatpush1.msra.mxu0 0.0
    %95 = vmatprep.subr.mxu0 0.0
    %96 = vmatpush1.msra.mxu0 0.0
    %97 = vmatprep.subr.mxu0 0.0
    %98 = vmatpush1.msra.mxu0 0.0
    %99 = vmatprep.subr.mxu0 0.0
    %100 = vmatpush1.msra.mxu0 0.0
    %101 = vmatprep.subr.mxu0 0.0
    %102 = vmatpush1.msra.mxu0 0.0
    %103 = vmatprep.subr.mxu0 0.0
    %104 = vmatpush1.msra.mxu0 0.0
    %105 = vmatprep.subr.mxu0 0.0
    %106 = vmatpush1.msra.mxu0 0.0
    %107 = vmatprep.subr.mxu0 0.0
    %108 = vmatpush1.msra.mxu0 0.0
    %109 = vmatprep.subr.mxu0 0.0
    %110 = vmatpush1.msra.mxu0 0.0
    %111 = vmatprep.subr.mxu0 0.0
    %112 = vmatpush1.msra.mxu0 0.0
    %113 = vmatprep.subr.mxu0 0.0
    %114 = vmatpush1.msra.mxu0 0.0
    %115 = vmatprep.subr.mxu0 0.0
    %116 = vmatpush1.msra.mxu0 0.0
    %117 = vmatprep.subr.mxu0 0.0
    %118 = vmatpush1.msra.mxu0 0.0
    %119 = vmatprep.mubr.f32.mxu0 0.0
    %120 = vmatmul.mubr.f32.gmra.mrb[0].mxu0 %v53
    %v121 = vpop.f32.mrb[0].mxu0
    %v122 = vadd.f32 0.0, %v121
    %v123 = vpop.f32.mrb[0].mxu0
    %124 = vdwg.mxu0
    %v126 = vsel %vm51, %v122, 0
    %v129 = vsel %vm51, %v37, 0
    %v132 = vsel %vm51, %v38, 0
    %v135 = vsel %vm51, %v39, 0
    %v138 = vsel %vm51, %v40, 0
    %140 = vmatprep.subr.mxu0 0.0
    %141 = vmatpush1.xpose.msra.mxu0 %v129
    %142 = vmatprep.subr.mxu0 0.0
    %143 = vmatpush1.xpose.msra.mxu0 %v132
    %144 = vmatprep.subr.mxu0 0.0
    %145 = vmatpush1.xpose.msra.mxu0 %v135
    %146 = vmatprep.subr.mxu0 0.0
    %147 = vmatpush1.xpose.msra.mxu0 %v138
    %148 = vmatprep.subr.mxu0 0.0
    %149 = vmatpush1.xpose.msra.mxu0 0.0
    %150 = vmatprep.subr.mxu0 0.0
    %151 = vmatpush1.xpose.msra.mxu0 0.0
    %152 = vmatprep.subr.mxu0 0.0
    %153 = vmatpush1.xpose.msra.mxu0 0.0
    %154 = vmatprep.subr.mxu0 0.0
    %155 = vmatpush1.xpose.msra.mxu0 0.0
    %156 = vmatprep.subr.mxu0 0.0
    %157 = vmatpush1.xpose.msra.mxu0 0.0
    %158 = vmatprep.subr.mxu0 0.0
    %159 = vmatpush1.xpose.msra.mxu0 0.0
    %160 = vmatprep.subr.mxu0 0.0
    %161 = vmatpush1.xpose.msra.mxu0 0.0
    %162 = vmatprep.subr.mxu0 0.0
    %163 = vmatpush1.xpose.msra.mxu0 0.0
    %164 = vmatprep.subr.mxu0 0.0
    %165 = vmatpush1.xpose.msra.mxu0 0.0
    %166 = vmatprep.subr.mxu0 0.0
    %167 = vmatpush1.xpose.msra.mxu0 0.0
    %168 = vmatprep.subr.mxu0 0.0
    %169 = vmatpush1.xpose.msra.mxu0 0.0
    %170 = vmatprep.subr.mxu0 0.0
    %171 = vmatpush1.xpose.msra.mxu0 0.0
    %172 = vmatprep.subr.mxu0 0.0
    %173 = vmatpush1.xpose.msra.mxu0 0.0
    %174 = vmatprep.subr.mxu0 0.0
    %175 = vmatpush1.xpose.msra.mxu0 0.0
    %176 = vmatprep.subr.mxu0 0.0
    %177 = vmatpush1.xpose.msra.mxu0 0.0
    %178 = vmatprep.subr.mxu0 0.0
    %179 = vmatpush1.xpose.msra.mxu0 0.0
    %180 = vmatprep.subr.mxu0 0.0
    %181 = vmatpush1.xpose.msra.mxu0 0.0
    %182 = vmatprep.subr.mxu0 0.0
    %183 = vmatpush1.xpose.msra.mxu0 0.0
    %184 = vmatprep.subr.mxu0 0.0
    %185 = vmatpush1.xpose.msra.mxu0 0.0
    %186 = vmatprep.subr.mxu0 0.0
    %187 = vmatpush1.xpose.msra.mxu0 0.0
    %188 = vmatprep.subr.mxu0 0.0
    %189 = vmatpush1.xpose.msra.mxu0 0.0
    %190 = vmatprep.subr.mxu0 0.0
    %191 = vmatpush1.xpose.msra.mxu0 0.0
    %192 = vmatprep.subr.mxu0 0.0
    %193 = vmatpush1.xpose.msra.mxu0 0.0
    %194 = vmatprep.subr.mxu0 0.0
    %195 = vmatpush1.xpose.msra.mxu0 0.0
    %196 = vmatprep.subr.mxu0 0.0
    %197 = vmatpush1.xpose.msra.mxu0 0.0
    %198 = vmatprep.subr.mxu0 0.0
    %199 = vmatpush1.xpose.msra.mxu0 0.0
    %200 = vmatprep.subr.mxu0 0.0
    %201 = vmatpush1.xpose.msra.mxu0 0.0
    %202 = vmatprep.subr.mxu0 0.0
    %203 = vmatpush1.xpose.msra.mxu0 0.0
    %204 = vmatprep.mubr.f32.mxu0 0.0
    %205 = vmatmul.mubr.f32.gmra.mrb[0].mxu0 %v126
    %v206 = vpop.f32.mrb[0].mxu0
    %v207 = vadd.f32 0.0, %v206
    %v208 = vpop.f32.mrb[0].mxu0
    %209 = vdwg.mxu0
    %v210 = vld [vmem:[%s1] sm:$0x1]
    %v212 = vlaneseq
    %v213 = vshrl.u32 %v212, 7
    %v214 = vsub.s32 0, %v213
    %v215 = vrot.slane %v210, %v214
    %v217 = vsub.f32 %v207, %v215
    %v218 = vmul.f32 %v217, 0.14285715
    %v219 = vmul.f32 %v207, 0.125
    %v220 = vsel %vm48, %v218, %v219
    %s221 = sld [smem:[#allocation2]]
    %v222 = vstv %s221
    %v223 = vmul.f32 %v222, %v220
    %s224 = sld [smem:[#allocation3]]
    %v225 = vstv %s224
    %v226 = vadd.f32 %v223, %v225
    %vm227 = vcmask 257024
    %v228 = vsel %vm227, %v226, -inf
    %v229 = vrot.slane %v228, 4
    %v230 = vmax.f32 %v228, %v229
    %v231 = vrot.slane %v230, 2
    %v232 = vmax.f32 %v230, %v231
    %v233 = vrot.slane %v232, 1
    %v234 = vmax.f32 %v232, %v233
    %v235 = vsub.f32 %v226, %v234
    %v236 = vmul.f32 %v235, 1.442695
    %v237 = vpow.pop %v236
    %v238 = vsel %vm227, %v237, 0.0
    %v239 = vrot.slane %v238, 4
    %v240 = vadd.f32 %v238, %v239
    %v241 = vrot.slane %v240, 2
    %v242 = vadd.f32 %v240, %v241
    %v243 = vrot.slane %v242, 1
    %v244 = vadd.f32 %v242, %v243
    %v245 = vlog2.pop %v244
    %v246 = vmul.f32 %v245, 0.6931472
    %v247 = vadd.f32 %v234, %v246
    %v248 = vmul.f32 %v226, %v50
    %v249 = vsel %vm227, %v248, 0.0
    %v250 = vrot.slane %v249, 4
    %v251 = vadd.f32 %v249, %v250
    %v252 = vrot.slane %v251, 2
    %v253 = vadd.f32 %v251, %v252
    %v254 = vrot.slane %v253, 1
    %v255 = vadd.f32 %v253, %v254
    %v256 = vsub.f32 %v247, %v255
    %vm257 = vcmask 253952
    %v258 = vsel %vm257, %v256, 0.0
    %259 = vadd.xlane.f32.xlu0 %v258
    %v260 = vpop.xlane.xlu0 %259
    %v261 = vrot.slane %v260, 4
    %v262 = vadd.f32 %v260, %v261
    %v263 = vrot.slane %v262, 2
    %v264 = vadd.f32 %v262, %v263
    %v265 = vrot.slane %v264, 1
    %v266 = vadd.f32 %v264, %v265
    %s267 = vtos %v266
    %v268 = vrcp.pop 32.0
    %s269 = vtos %v268
    %s270 = smul.f32 %s267, %s269
    %s271 = scalar_lea.smem [#allocation7], 0
    %272 = sst [smem:[%s271]] %s270
    // Predicated region
    $region26: #{tpu_custom_call.1} parent=1 // pred_check
      _
    $region27: #{tpu_custom_call.1} parent=1 // pred_check_branch
      %274 = sbr.rel (0) target = $region29
    $region28: #{tpu_custom_call.1} parent=1 // pred_region
      %s276 = ssub.s32 16, 16
      %277 = vsyncadd [#allocation6], %s276
      %280 = dma.smem_to_hbm [#allocation7], 16, %s5, [#allocation6]
    $region29: #{tpu_custom_call.1} parent=1 // pred_fallthru
      _
    // Predicated region
    $region30: #{tpu_custom_call.1} parent=1 // pred_check
      _
    $region31: #{tpu_custom_call.1} parent=1 // pred_check_branch
      %282 = sbr.rel (0) target = $region33
    $region32: #{tpu_custom_call.1} parent=1 // pred_region
      %283 = dma.done [#allocation6], 16
    $region33: #{tpu_custom_call.1} parent=1 // pred_fallthru
      _
    %284 = sfence
    %285 = vsyncpa [#allocation5], 1
    %286 = vsyncpa [#allocation6], 1

</llo_original>
